<compile_context>
chip_gen: v5e
topology: v5e:2x2
jax: 0.10.0
libtpu: 0.0.40
codegen_flags: <defaults>
</compile_context>

<pallas_src>
import functools
import math

import jax
import jax.numpy as jnp
from jax.experimental import pallas as pl
from jax.experimental.pallas import tpu as pltpu


_LOG2_E = 1.4426950408889634
_SINGLE_PASS_MAX_LK = 2048       # auto single-pass only up to this many keys


def _round_up(x, m):
    return ((x + m - 1) // m) * m


def _largest_divisor_leq(n, cap):
    for g in range(min(n, cap), 0, -1):
        if n % g == 0:
            return g
    return 1


def _sublane_multiple(itemsize):
    # Packing granularity of the second-minor dim in VMEM per element width.
    return {4: 8, 2: 16, 1: 32}.get(itemsize, 8)


def _padded_tile_bytes(rows, cols, itemsize):
    # Physical VMEM footprint of one (rows, cols) tile: lanes pad to 128,
    # sublanes pad to the dtype packing granularity.
    return (_round_up(max(rows, 1), _sublane_multiple(itemsize))
            * _round_up(max(cols, 1), 128) * itemsize)


def _vmem_estimate(GH, TQ, TK, Dk, Dvp, itemsize, single_pass):
    nbuf = 2  # Pallas double-buffers every pipelined operand.
    q_b = nbuf * GH * _padded_tile_bytes(TQ, Dk, itemsize)
    k_b = nbuf * GH * _padded_tile_bytes(TK, Dk, itemsize)
    v_b = nbuf * GH * _padded_tile_bytes(TK, Dvp, itemsize)
    o_b = nbuf * GH * _padded_tile_bytes(TQ, Dvp, itemsize)
    # f32 score temporaries s and p plus the matmul-dtype cast of p.
    s_p = (2 * GH * _padded_tile_bytes(TQ, TK, 4)
           + GH * _padded_tile_bytes(TQ, TK, itemsize))
    if single_pass:
        scratch = GH * _padded_tile_bytes(TQ, Dvp, 4)       # f32 PV product
    else:
        scratch = (2 * GH * _padded_tile_bytes(TQ, 1, 4)    # m, l (lane-padded)
                   + GH * _padded_tile_bytes(TQ, Dvp, 4))   # f32 accumulator
    return q_b + k_b + v_b + o_b + s_p + scratch


def _attention_single_pass_kernel(q_ref, k_ref, v_ref, o_ref, *,
                                  scale, lk_valid, mask_keys, exact_recip):
    # q_ref: (GH, TQ, Dk)  k_ref: (GH, Lkp, Dk)  v_ref: (GH, Lkp, Dvp)
    mm_dtype = k_ref.dtype
    # `scale` already contains log2(e); scores live in the log2 domain so the
    # softmax uses exp2 (saves the full-tensor *log2(e) multiply exp implies).
    q = (q_ref[...].astype(jnp.float32) * scale).astype(mm_dtype)
    s = jnp.einsum("bqd,bkd->bqk", q, k_ref[...],
                   preferred_element_type=jnp.float32)       # (GH, TQ, Lkp)
    if mask_keys:
        col = jax.lax.broadcasted_iota(jnp.int32, s.shape, 2)
        s = jnp.where(col < lk_valid, s, -jnp.inf)
    m = jnp.max(s, axis=-1, keepdims=True)
    p = jnp.exp2(s - m)
    l = jnp.sum(p, axis=-1, keepdims=True)
    pv = jnp.einsum("bqk,bkd->bqd", p.astype(mm_dtype), v_ref[...],
                    preferred_element_type=jnp.float32)
    inv = (1.0 / l) if exact_recip else pl.reciprocal(l, approx=True)
    o_ref[...] = (pv * inv).astype(o_ref.dtype)


def _flash_attention_kernel(q_ref, k_ref, v_ref, o_ref, m_ref, l_ref, acc_ref,
                            *, scale, k_tile, lk_valid, mask_keys, exact_recip):
    # q_ref: (GH, TQ, Dk)  k_ref: (GH, TK, Dk)  v_ref: (GH, TK, Dvp)
    # scratch: m_ref / l_ref (GH, TQ, 1) f32, acc_ref (GH, TQ, Dvp) f32.
    kv_idx = pl.program_id(2)
    last_kv = pl.num_programs(2) - 1

    @pl.when(kv_idx == 0)
    def _init():
        m_ref[...] = jnp.full_like(m_ref, -jnp.inf)
        l_ref[...] = jnp.zeros_like(l_ref)
        acc_ref[...] = jnp.zeros_like(acc_ref)

    mm_dtype = k_ref.dtype
    q = (q_ref[...].astype(jnp.float32) * scale).astype(mm_dtype)
    k = k_ref[...]
    v = v_ref[...]
    s = jnp.einsum("bqd,bkd->bqk", q, k,
                   preferred_element_type=jnp.float32)        # (GH, TQ, TK)

    if mask_keys:
        # Only the last key tile contains padded columns (padding < TK), so
        # gate the iota/compare/select to that single step.
        def _mask_last(x):
            col = (kv_idx * k_tile
                   + jax.lax.broadcasted_iota(jnp.int32, x.shape, 2))
            return jnp.where(col < lk_valid, x, -jnp.inf)

        s = jax.lax.cond(kv_idx == last_kv, _mask_last, lambda x: x, s)

    m_prev = m_ref[...]
    l_prev = l_ref[...]
    m_new = jnp.maximum(m_prev, jnp.max(s, axis=-1, keepdims=True))
    # NOTE: if an entire key tile were fully masked, m_new could stay -inf and
    # alpha would be NaN; the wrapper guarantees the last tile always has at
    # least one valid key column (padding < TK), so this cannot happen.
    alpha = jnp.exp2(m_prev - m_new)
    p = jnp.exp2(s - m_new)                                   # f32

    m_ref[...] = m_new
    l_ref[...] = alpha * l_prev + jnp.sum(p, axis=-1, keepdims=True)
    acc_ref[...] = alpha * acc_ref[...] + jnp.einsum(
        "bqk,bkd->bqd", p.astype(mm_dtype), v,
        preferred_element_type=jnp.float32)

    @pl.when(kv_idx == last_kv)
    def _finalize():
        l = l_ref[...]
        inv = (1.0 / l) if exact_recip else pl.reciprocal(l, approx=True)
        o_ref[...] = (acc_ref[...] * inv).astype(o_ref.dtype)


def scaled_dot_product_attention(Q, K, V, d_k, *, q_tile=256, k_tile=512,
                                 max_heads_per_step=8, single_pass=None,
                                 use_bf16_matmul=False):
    """
    Q: [batch_size, n_heads, len_q, d_k]
    K: [batch_size, n_heads, len_k, d_k]
    V: [batch_size, n_heads, len_k, d_v]
    returns context: [batch_size, n_heads, len_q, d_v]
    """
    B, H, Lq, Dk = Q.shape
    Lk = K.shape[2]
    Dv = V.shape[3]
    BH = B * H
    out_dtype = Q.dtype

    q = Q.reshape(BH, Lq, Dk)
    k = K.reshape(BH, Lk, Dk)
    v = V.reshape(BH, Lk, Dv)

    if use_bf16_matmul and q.dtype == jnp.float32:
        # MXU runs 2-4x faster on bf16 operands; accumulation stays f32.
        q = q.astype(jnp.bfloat16)
        k = k.astype(jnp.bfloat16)
        v = v.astype(jnp.bfloat16)

    itemsize = jnp.dtype(q.dtype).itemsize
    exact_recip = jnp.dtype(out_dtype) == jnp.float32
    Dvp = _round_up(Dv, 128)                       # lane-dense output stores

    # Per-generation VMEM budget: 3/4 of physical per-core capacity
    # (~96 MiB on v5e/v6e's 128 MiB, ~48 MiB on v7x's 64 MiB).
    try:
        vmem_cap = int(pltpu.get_tpu_info().vmem_capacity_bytes)
    except Exception:
        vmem_cap = 64 * 1024 * 1024                # conservative (v7x) fallback
    budget = max((vmem_cap * 3) // 4, 24 * 1024 * 1024)

    GH = _largest_divisor_leq(BH, max_heads_per_step)
    TQ = min(_round_up(Lq, 8), _round_up(q_tile, 8))
    TK_stream = min(_round_up(Lk, 8), _round_up(k_tile, 8))
    Lk_full = _round_up(Lk, 8)

    def _shrink(gh, tq, tk, sp):
        while _vmem_estimate(gh, tq, tk, Dk, Dvp, itemsize, sp) > budget:
            if gh > 1:
                gh = _largest_divisor_leq(BH, gh - 1)
            elif (not sp) and tk > 128:
                tk = max(128, _round_up(tk // 2, 8))
            elif tq > 128:
                tq = max(128, _round_up(tq // 2, 8))
            else:
                break
        return gh, tq, tk

    # Single-pass path for short Lk.
    if single_pass is None:
        single_pass = Lk_full <= _SINGLE_PASS_MAX_LK
    if single_pass:
        gh, tq, _ = _shrink(GH, TQ, Lk_full, True)
        if _vmem_estimate(gh, tq, Lk_full, Dk, Dvp, itemsize, True) <= budget:
            GH, TQ, TK = gh, tq, Lk_full
        else:
            single_pass = False                    # K/V too large: stream it
    if not single_pass:
        GH, TQ, TK = _shrink(GH, TQ, TK_stream, False)

    Lqp = _round_up(Lq, TQ)
    # Keep both v7x TensorCores busy: expose >= 2 parallel grid steps when
    # possible (cost elsewhere is one extra ~0.35us grid step).
    if (BH // GH) * (Lqp // TQ) < 2:
        if GH > 1:
            GH = _largest_divisor_leq(BH, max(1, GH // 2))
        elif Lq > 8 and TQ > 8:
            TQ = _round_up(max(8, (TQ + 1) // 2), 8)
            Lqp = _round_up(Lq, TQ)

    Lkp = _round_up(Lk, TK)
    mask_keys = Lkp != Lk

    # Zero-pad so every block is fully defined; padded key columns are masked
    # to -inf in-kernel, padded query rows / value lanes are sliced off after.
    if Lqp != Lq:
        q = jnp.pad(q, ((0, 0), (0, Lqp - Lq), (0, 0)))
    if Lkp != Lk:
        k = jnp.pad(k, ((0, 0), (0, Lkp - Lk), (0, 0)))
        v = jnp.pad(v, ((0, 0), (0, Lkp - Lk), (0, 0)))
    if Dvp != Dv:
        v = jnp.pad(v, ((0, 0), (0, 0), (0, Dvp - Dv)))

    # 1/sqrt(d_k) folded into the small Q tile; log2(e) folded in too so the
    # softmax uses exp2 directly (factor cancels in the final acc/l divide).
    scale = _LOG2_E / math.sqrt(d_k)

    est = _vmem_estimate(GH, TQ, TK, Dk, Dvp, itemsize, single_pass)
    vmem_limit = int(min(max(int(est * 1.5), 16 * 1024 * 1024), budget))

    if single_pass:
        grid = (BH // GH, Lqp // TQ)
        kernel = functools.partial(
            _attention_single_pass_kernel,
            scale=scale, lk_valid=Lk, mask_keys=mask_keys,
            exact_recip=exact_recip)
        grid_spec = pltpu.PrefetchScalarGridSpec(
            num_scalar_prefetch=0,
            grid=grid,
            in_specs=[
                pl.BlockSpec((GH, TQ, Dk), lambda b, qi: (b, qi, 0)),
                pl.BlockSpec((GH, Lkp, Dk), lambda b, qi: (b, 0, 0)),
                pl.BlockSpec((GH, Lkp, Dvp), lambda b, qi: (b, 0, 0)),
            ],
            out_specs=pl.BlockSpec((GH, TQ, Dvp), lambda b, qi: (b, qi, 0)),
        )
        dim_sem = ("parallel", "parallel")
    else:
        grid = (BH // GH, Lqp // TQ, Lkp // TK)
        kernel = functools.partial(
            _flash_attention_kernel,
            scale=scale, k_tile=TK, lk_valid=Lk, mask_keys=mask_keys,
            exact_recip=exact_recip)
        grid_spec = pltpu.PrefetchScalarGridSpec(
            num_scalar_prefetch=0,
            grid=grid,
            in_specs=[
                pl.BlockSpec((GH, TQ, Dk), lambda b, qi, ki: (b, qi, 0)),
                pl.BlockSpec((GH, TK, Dk), lambda b, qi, ki: (b, ki, 0)),
                pl.BlockSpec((GH, TK, Dvp), lambda b, qi, ki: (b, ki, 0)),
            ],
            out_specs=pl.BlockSpec((GH, TQ, Dvp), lambda b, qi, ki: (b, qi, 0)),
            scratch_shapes=[
                pltpu.VMEM((GH, TQ, 1), jnp.float32),    # running max m
                pltpu.VMEM((GH, TQ, 1), jnp.float32),    # running denom l
                pltpu.VMEM((GH, TQ, Dvp), jnp.float32),  # running numerator
            ],
        )
        dim_sem = ("parallel", "parallel", "arbitrary")

    out = pl.pallas_call(
        kernel,
        out_shape=jax.ShapeDtypeStruct((BH, Lqp, Dvp), out_dtype),
        grid_spec=grid_spec,
        compiler_params=pltpu.CompilerParams(
            dimension_semantics=dim_sem,
            vmem_limit_bytes=vmem_limit,
        ),
    )(q, k, v)

    return out[:, :Lq, :Dv].reshape(B, H, Lq, Dv)


def _reference(Q, K, V, d_k):
    qf = Q.astype(jnp.float32)
    kf = K.astype(jnp.float32)
    vf = V.astype(jnp.float32)
    scores = jnp.einsum("bhqd,bhkd->bhqk", qf, kf) / math.sqrt(d_k)
    attn = jax.nn.softmax(scores, axis=-1)
    return jnp.einsum("bhqk,bhkd->bhqd", attn, vf).astype(Q.dtype)


if __name__ == "__main__":
    key = jax.random.PRNGKey(0)

    # Test 1: small f32 shapes matching the module's forward signature
    # (auto single-pass path, exact f32 normalization).
    B, H, Lq, Lk, Dk, Dv = 2, 4, 8, 8, 32, 32
    k1, k2, k3, key = jax.random.split(key, 4)
    Q = jax.random.normal(k1, (B, H, Lq, Dk), dtype=jnp.float32)
    K = jax.random.normal(k2, (B, H, Lk, Dk), dtype=jnp.float32)
    V = jax.random.normal(k3, (B, H, Lk, Dv), dtype=jnp.float32)

    out = jax.block_until_ready(scaled_dot_product_attention(Q, K, V, Dk))
    ref = _reference(Q, K, V, Dk)
    assert out.shape == (B, H, Lq, Dv), out.shape
    assert jnp.allclose(out, ref, atol=1e-2, rtol=1e-2), float(
        jnp.max(jnp.abs(out - ref)))

    # Test 2: bf16, ragged seq lens, small tiles, forced streaming path so the
    # online-softmax accumulation, lax.cond key masking and padding paths are
    # exercised.
    B, H, Lq, Lk, Dk, Dv = 1, 2, 72, 100, 32, 48
    k1, k2, k3, key = jax.random.split(key, 4)
    Qb = jax.random.normal(k1, (B, H, Lq, Dk), dtype=jnp.bfloat16)
    Kb = jax.random.normal(k2, (B, H, Lk, Dk), dtype=jnp.bfloat16)
    Vb = jax.random.normal(k3, (B, H, Lk, Dv), dtype=jnp.bfloat16)

    outb = jax.block_until_ready(
        scaled_dot_product_attention(Qb, Kb, Vb, Dk, q_tile=32, k_tile=32,
                                     single_pass=False))
    refb = _reference(Qb, Kb, Vb, Dk)
    assert outb.shape == (B, H, Lq, Dv), outb.shape
    errb = float(jnp.max(jnp.abs(outb.astype(jnp.float32)
                                 - refb.astype(jnp.float32))))
    assert jnp.allclose(outb.astype(jnp.float32), refb.astype(jnp.float32),
                        atol=5e-2, rtol=5e-2), errb

    # Test 3: f32 inputs with the bf16-matmul fast path, ragged dims, default
    # tiles (auto single-pass with key masking and head grouping).
    B, H, Lq, Lk, Dk, Dv = 1, 8, 40, 100, 64, 80
    k1, k2, k3, key = jax.random.split(key, 4)
    Qc = jax.random.normal(k1, (B, H, Lq, Dk), dtype=jnp.float32)
    Kc = jax.random.normal(k2, (B, H, Lk, Dk), dtype=jnp.float32)
    Vc = jax.random.normal(k3, (B, H, Lk, Dv), dtype=jnp.float32)

    outc = jax.block_until_ready(
        scaled_dot_product_attention(Qc, Kc, Vc, Dk, use_bf16_matmul=True))
    refc = _reference(Qc, Kc, Vc, Dk)
    assert outc.shape == (B, H, Lq, Dv), outc.shape
    errc = float(jnp.max(jnp.abs(outc - refc)))
    assert jnp.allclose(outc, refc, atol=5e-2, rtol=5e-2), errc

    print("KERNEL_OK")
</pallas_src>

<mosaic_0001>
module attributes {stable_mosaic.version = 11 : i64} {
  func.func @_attention_single_pass_kernel(%arg0: i32, %arg1: i32, %arg2: memref<4x8x32xf32, #tpu.memory_space<vmem>>, %arg3: memref<4x8x32xf32, #tpu.memory_space<vmem>>, %arg4: memref<4x8x128xf32, #tpu.memory_space<vmem>>, %arg5: memref<4x8x128xf32, #tpu.memory_space<vmem>>) attributes {dimension_semantics = [#tpu.dimension_semantics<parallel>, #tpu.dimension_semantics<parallel>], iteration_bounds = array<i64: 2, 1>, scalar_prefetch = 0 : i64, scratch_operands = 0 : i64, tpu.core_type = #tpu.core_type<tc>, window_params = [{transform_indices = @transform_0, window_bounds = array<i64: 4, 8, 32>}, {transform_indices = @transform_1, window_bounds = array<i64: 4, 8, 32>}, {transform_indices = @transform_2, window_bounds = array<i64: 4, 8, 128>}, {transform_indices = @transform_3, window_bounds = array<i64: 4, 8, 128>}]} {
    %c0 = arith.constant 0 : index
    %c0_0 = arith.constant 0 : index
    %c0_1 = arith.constant 0 : index
    %0 = vector.load %arg2[%c0, %c0_0, %c0_1] : memref<4x8x32xf32, #tpu.memory_space<vmem>>, vector<4x8x32xf32>
    %cst = arith.constant 0.255034864 : f32
    %1 = vector.broadcast %cst : f32 to vector<4x8x32xf32>
    %2 = arith.mulf %0, %1 : vector<4x8x32xf32>
    %c0_2 = arith.constant 0 : index
    %c0_3 = arith.constant 0 : index
    %c0_4 = arith.constant 0 : index
    %3 = vector.load %arg3[%c0_2, %c0_3, %c0_4] : memref<4x8x32xf32, #tpu.memory_space<vmem>>, vector<4x8x32xf32>
    "tpu.trace_start"() <{level = 10 : i32, message = "bqd,bkd->bqk"}> : () -> ()
    %cst_5 = arith.constant dense<0.000000e+00> : vector<4x8x8xf32>
    %4 = tpu.matmul %2, %3, %cst_5 {dimension_numbers = #tpu.dot_dimension_numbers<[2], [2], [1], [1], [0, 0, 0, 1, 1, 1], [0], [0]>} : vector<4x8x32xf32>, vector<4x8x32xf32>, vector<4x8x8xf32> -> vector<4x8x8xf32>
    "tpu.trace_stop"() : () -> ()
    %cst_6 = arith.constant dense<0xFF800000> : vector<4x8xf32>
    %5 = vector.multi_reduction <maximumf>, %4, %cst_6 [2] : vector<4x8x8xf32> to vector<4x8xf32>
    %6 = vector.shape_cast %5 : vector<4x8xf32> to vector<4x8x1xf32>
    %7 = vector.broadcast %6 : vector<4x8x1xf32> to vector<4x8x8xf32>
    %8 = arith.subf %4, %7 : vector<4x8x8xf32>
    %9 = math.exp2 %8 : vector<4x8x8xf32>
    %cst_7 = arith.constant dense<0.000000e+00> : vector<4x8xf32>
    %10 = vector.multi_reduction <add>, %9, %cst_7 [2] : vector<4x8x8xf32> to vector<4x8xf32>
    %11 = vector.shape_cast %10 : vector<4x8xf32> to vector<4x8x1xf32>
    %c0_8 = arith.constant 0 : index
    %c0_9 = arith.constant 0 : index
    %c0_10 = arith.constant 0 : index
    %12 = vector.load %arg4[%c0_8, %c0_9, %c0_10] : memref<4x8x128xf32, #tpu.memory_space<vmem>>, vector<4x8x128xf32>
    "tpu.trace_start"() <{level = 10 : i32, message = "bqk,bkd->bqd"}> : () -> ()
    %cst_11 = arith.constant dense<0.000000e+00> : vector<4x8x128xf32>
    %13 = tpu.matmul %9, %12, %cst_11 {dimension_numbers = #tpu.dot_dimension_numbers<[2], [1], [1], [2], [0, 0, 0, 1, 1, 2], [0], [0]>} : vector<4x8x8xf32>, vector<4x8x128xf32>, vector<4x8x128xf32> -> vector<4x8x128xf32>
    "tpu.trace_stop"() : () -> ()
    %cst_12 = arith.constant 1.000000e+00 : f32
    %14 = vector.broadcast %cst_12 : f32 to vector<4x8x1xf32>
    %15 = arith.divf %14, %11 : vector<4x8x1xf32>
    %16 = vector.broadcast %15 : vector<4x8x1xf32> to vector<4x8x128xf32>
    %17 = arith.mulf %13, %16 : vector<4x8x128xf32>
    %c0_13 = arith.constant 0 : index
    %c0_14 = arith.constant 0 : index
    %c0_15 = arith.constant 0 : index
    %18 = vector.load %arg5[%c0_13, %c0_14, %c0_15] : memref<4x8x128xf32, #tpu.memory_space<vmem>>, vector<4x8x128xf32>
    tpu.vector_store %arg5[%c0_13, %c0_14, %c0_15], %17 {strides = array<i32>} : memref<4x8x128xf32, #tpu.memory_space<vmem>>, vector<4x8x128xf32>,
    return
  }
  func.func @transform_0(%arg0: i32, %arg1: i32) -> (i32, i32, i32) {
    %c0_i32 = arith.constant 0 : i32
    %c0_i32_0 = arith.constant 0 : i32
    return %arg0, %arg1, %c0_i32 : i32, i32, i32
  }
  func.func @transform_1(%arg0: i32, %arg1: i32) -> (i32, i32, i32) {
    %c0_i32 = arith.constant 0 : i32
    %c0_i32_0 = arith.constant 0 : i32
    %c0_i32_1 = arith.constant 0 : i32
    return %arg0, %c0_i32, %c0_i32_0 : i32, i32, i32
  }
  func.func @transform_2(%arg0: i32, %arg1: i32) -> (i32, i32, i32) {
    %c0_i32 = arith.constant 0 : i32
    %c0_i32_0 = arith.constant 0 : i32
    %c0_i32_1 = arith.constant 0 : i32
    return %arg0, %c0_i32, %c0_i32_0 : i32, i32, i32
  }
  func.func @transform_3(%arg0: i32, %arg1: i32) -> (i32, i32, i32) {
    %c0_i32 = arith.constant 0 : i32
    %c0_i32_0 = arith.constant 0 : i32
    return %arg0, %arg1, %c0_i32 : i32, i32, i32
  }
}

</mosaic_0001>

<llo_original>
// kernel: tpu_custom_call.1
$region0: #{tpu_custom_call.1}
  #allocation0 [shape = 'u32[]', space=smem, size = 0x4, offset = 0x4, fixed_abs, tag = 'smem constant byte address 0x4 - core index']
  #allocation1 [shape = 'u32[72,128]{1,0:T(1,128)}', space=vmem, size = 0x9000, scoped, tag = 'internal scratch']
  %s0 = inlined_call_operand.hbm [shape: f32[8,8,32], index: 0, kind: input, shape index: {}]
  %s1 = inlined_call_operand.hbm [shape: f32[8,8,32], index: 1, kind: input, shape index: {}]
  %s2 = inlined_call_operand.hbm [shape: f32[8,8,128], index: 2, kind: input, shape index: {}]
  %s3 = inlined_call_operand.hbm [shape: f32[8,8,128], index: 3, kind: output, shape index: {}]
  %s4 = sld [smem:[#allocation0]]
  $region57: #{tpu_custom_call.1} parent=0
    _
  %s6 = ssub.s32 1, %s4
  %s7 = scalar_select 0, %s6, %s4
  $region1: #{tpu_custom_call.1} parent=0
    #allocation2 [shape = 'u8[32768]{0}', space=vmem, size = 0x8000, scoped, tag = 'input window, operand 0']
    #allocation3 [shape = 's32[2]{0}', space=sflag, size = 0x8, scoped, tag = 'scoped memory for tpu_custom_call.1']
    #allocation4 [shape = 's32[2]{0}', space=sflag, size = 0x8, scoped, tag = 'scoped memory for tpu_custom_call.1']
    #allocation5 [shape = 'u8[32768]{0}', space=vmem, size = 0x8000, scoped, tag = 'input window, operand 1']
    #allocation6 [shape = 's32[2]{0}', space=sflag, size = 0x8, scoped, tag = 'scoped memory for tpu_custom_call.1']
    #allocation7 [shape = 'u8[32768]{0}', space=vmem, size = 0x8000, scoped, tag = 'input window, operand 2']
    #allocation8 [shape = 'u8[32768]{0}', space=vmem, size = 0x8000, scoped, tag = 'output window, operand 0']
    %8 = vsyncpa [#allocation3], 0
    %s9 = scalar_lea.sflag [#allocation3], 1
    %10 = vsyncpa %s9, 0
    %11 = vsyncpa [#allocation6], 0
    %s12 = scalar_lea.sflag [#allocation6], 1
    %13 = vsyncpa %s12, 0
    %14 = vsyncpa [#allocation4], 0
    %s15 = scalar_lea.sflag [#allocation4], 1
    %16 = vsyncpa %s15, 0
    loop: start=0, step=1, limit=4
    $region2: #{tpu_custom_call.1} parent=1 // loop_pre_header
      _
    $region3: #{tpu_custom_call.1} parent=1 // loop_header
      %s18 = sphi 0, %s22
      %p19 = scmp.ge.s32.totalorder %s18, 4
      %s25 = sphi 0, %s37
      %s26 = sphi 0, %s33
      %s27 = sphi 0, %s25
      %s28 = sphi 0, %s26
      %s29 = sphi 0, %s27
      %s30 = sphi 0, %s28
      %s42 = sphi 0, %s44
      %s45 = sphi 0, %s42
      %s46 = sphi 0, %s45
      %s62 = sphi 0, %s46
      %s68 = sphi 0, %s70
      %s71 = sphi 0, %s68
      %s72 = sphi 0, %s71
      %s88 = sphi 0, %s72
      %s94 = sphi 0, %s96
      %s97 = sphi 0, %s94
      %s98 = sphi 0, %s97
      %s114 = sphi 0, %s98
      %s122 = sphi 0, %s124
      %s125 = sphi 0, %s122
      %s126 = sphi 0, %s125
      %s142 = sphi 0, %s126
    $region4: #{tpu_custom_call.1} parent=1 // loop_header_branch
      %21 = sbr.rel (%p19) target = $region8
    $region5: #{tpu_custom_call.1} parent=1 // loop_body
      %s23 = ssub.s32 %s18, 1
      %s24 = ssub.s32 %s18, 2
      %s31 = sadd.s32 1, %s26
      %p32 = scmp.ge.s32.totalorder %s31, 1
      %s33 = scalar_select %p32, 0, %s31
      %s34 = sadd.s32 1, %s25
      %s35 = scalar_select %p32, %s34, %s25
      %p36 = scmp.ge.s32.totalorder %s35, 2
      %s37 = scalar_select %p36, 0, %s35
      %s38 = ssub.s32 %s25, %s37
      %s39 = ssub.s32 %s26, %s33
      %s40 = sor.u32 %s38, %s39
      %p41 = scmp.eq.s32.totalorder %s40, 0
      %s43 = sadd.s32 %s42, 1
      %s44 = scalar_select %p41, %s42, %s43
      %p47 = pneg %p41
      %p48 = scmp.eq.s32.totalorder %s18, 1
      %p49 = por %p47, %p48
      %p50 = scmp.ne.s32.totalorder %s42, %s45
      %p51 = scmp.eq.s32.totalorder %s18, 0
      %p52 = por %p50, %p51
      %p53 = scmp.ne.s32.totalorder %s42, %s45
      %p54 = scmp.eq.s32.totalorder %s23, 1
      %p55 = por %p53, %p54
      %p56 = scmp.ne.s32.totalorder %s45, %s46
      %p57 = scmp.eq.s32.totalorder %s23, 0
      %p58 = por %p56, %p57
      %p59 = scmp.ne.s32.totalorder %s45, %s46
      %p60 = scmp.eq.s32.totalorder %s24, 1
      %p61 = por %p59, %p60
      %p63 = scmp.ne.s32.totalorder %s46, %s62
      %p64 = scmp.eq.s32.totalorder %s24, 0
      %p65 = por %p63, %p64
      %s66 = ssub.s32 %s25, %s37
      %p67 = scmp.eq.s32.totalorder %s66, 0
      %s69 = sadd.s32 %s68, 1
      %s70 = scalar_select %p67, %s68, %s69
      %p73 = pneg %p67
      %p74 = scmp.eq.s32.totalorder %s18, 1
      %p75 = por %p73, %p74
      %p76 = scmp.ne.s32.totalorder %s68, %s71
      %p77 = scmp.eq.s32.totalorder %s18, 0
      %p78 = por %p76, %p77
      %p79 = scmp.ne.s32.totalorder %s68, %s71
      %p80 = scmp.eq.s32.totalorder %s23, 1
      %p81 = por %p79, %p80
      %p82 = scmp.ne.s32.totalorder %s71, %s72
      %p83 = scmp.eq.s32.totalorder %s23, 0
      %p84 = por %p82, %p83
      %p85 = scmp.ne.s32.totalorder %s71, %s72
      %p86 = scmp.eq.s32.totalorder %s24, 1
      %p87 = por %p85, %p86
      %p89 = scmp.ne.s32.totalorder %s72, %s88
      %p90 = scmp.eq.s32.totalorder %s24, 0
      %p91 = por %p89, %p90
      %s92 = ssub.s32 %s25, %s37
      %p93 = scmp.eq.s32.totalorder %s92, 0
      %s95 = sadd.s32 %s94, 1
      %s96 = scalar_select %p93, %s94, %s95
      %p99 = pneg %p93
      %p100 = scmp.eq.s32.totalorder %s18, 1
      %p101 = por %p99, %p100
      %p102 = scmp.ne.s32.totalorder %s94, %s97
      %p103 = scmp.eq.s32.totalorder %s18, 0
      %p104 = por %p102, %p103
      %p105 = scmp.ne.s32.totalorder %s94, %s97
      %p106 = scmp.eq.s32.totalorder %s23, 1
      %p107 = por %p105, %p106
      %p108 = scmp.ne.s32.totalorder %s97, %s98
      %p109 = scmp.eq.s32.totalorder %s23, 0
      %p110 = por %p108, %p109
      %p111 = scmp.ne.s32.totalorder %s97, %s98
      %p112 = scmp.eq.s32.totalorder %s24, 1
      %p113 = por %p111, %p112
      %p115 = scmp.ne.s32.totalorder %s98, %s114
      %p116 = scmp.eq.s32.totalorder %s24, 0
      %p117 = por %p115, %p116
      %s118 = ssub.s32 %s25, %s37
      %s119 = ssub.s32 %s26, %s33
      %s120 = sor.u32 %s118, %s119
      %p121 = scmp.eq.s32.totalorder %s120, 0
      %s123 = sadd.s32 %s122, 1
      %s124 = scalar_select %p121, %s122, %s123
      %p127 = pneg %p121
      %p128 = scmp.eq.s32.totalorder %s18, 1
      %p129 = por %p127, %p128
      %p130 = scmp.ne.s32.totalorder %s122, %s125
      %p131 = scmp.eq.s32.totalorder %s18, 0
      %p132 = por %p130, %p131
      %p133 = scmp.ne.s32.totalorder %s122, %s125
      %p134 = scmp.eq.s32.totalorder %s23, 1
      %p135 = por %p133, %p134
      %p136 = scmp.ne.s32.totalorder %s125, %s126
      %p137 = scmp.eq.s32.totalorder %s23, 0
      %p138 = por %p136, %p137
      %p139 = scmp.ne.s32.totalorder %s125, %s126
      %p140 = scmp.eq.s32.totalorder %s24, 1
      %p141 = por %p139, %p140
      %p143 = scmp.ne.s32.totalorder %s126, %s142
      %p144 = scmp.eq.s32.totalorder %s24, 0
      %p145 = por %p143, %p144
      %p146 = scmp.le.s32.totalorder 1, %s18
      %p147 = scmp.lt.s32.totalorder %s18, 3
      %p148 = pnand %p146, %p147
      %p149 = pneg %p148
      // Predicated region
      $region9: #{tpu_custom_call.1} parent=5 // pred_check
        _
      $region10: #{tpu_custom_call.1} parent=5 // pred_check_branch
        %151 = sbr.rel (%p148) target = $region12
      $region11: #{tpu_custom_call.1} parent=5 // pred_region
        %s152 = ssub.s32 %s18, 1
      $region12: #{tpu_custom_call.1} parent=5 // pred_fallthru
        _
      %p153 = scmp.lt.s32.totalorder %s18, 2
      // Predicated region
      $region13: #{tpu_custom_call.1} parent=5 // pred_check
        %p154 = pneg %p153
      $region14: #{tpu_custom_call.1} parent=5 // pred_check_branch
        %156 = sbr.rel (%p154) target = $region16
      $region15: #{tpu_custom_call.1} parent=5 // pred_region
        // Predicated region
        $region17: #{tpu_custom_call.1} parent=15 // pred_check
          %p157 = pneg %p52
        $region18: #{tpu_custom_call.1} parent=15 // pred_check_branch
          %159 = sbr.rel (%p157) target = $region20
        $region19: #{tpu_custom_call.1} parent=15 // pred_region
          %s160 = sand.u32 %s42, 1
          %s161 = scalar_lea.sflag [#allocation3], %s160
          %s162 = sand.u32 %s42, 1
          %s163 = smul.addr %s162, 32
          %s164 = scalar_lea.vmem [#allocation2], %s163
          %s165 = smul.u32 4, %s25
          %167 = vsyncadd %s161, 0
          %s168 = sadd.s32 %s26, %s165
          %s169 = smul.addr %s168, 8
          %s170 = scalar_lea.hbm %s0, %s169
          %s171 = sshll.u32 %s170, 4
          %s172 = int_to_ptr.hbm [resolvable:$true] %s171
          %s173 = sshll.u32 %s164, 4
          %s174 = int_to_ptr.vmem [resolvable:$true] %s173
          %179 = dma.hbm_to_vmem [thread:$0]  %s172, 512, %s174, %s161, 128, 128, 8
        $region20: #{tpu_custom_call.1} parent=15 // pred_fallthru
          _
        // Predicated region
        $region21: #{tpu_custom_call.1} parent=15 // pred_check
          %p180 = pneg %p78
        $region22: #{tpu_custom_call.1} parent=15 // pred_check_branch
          %182 = sbr.rel (%p180) target = $region24
        $region23: #{tpu_custom_call.1} parent=15 // pred_region
          %s183 = sand.u32 %s18, 1
          %s184 = scalar_lea.sflag [#allocation6], %s183
          %s185 = sand.u32 %s68, 1
          %s186 = smul.addr %s185, 32
          %s187 = scalar_lea.vmem [#allocation5], %s186
          %s188 = smul.u32 4, %s25
          %190 = vsyncadd %s184, 0
          %s191 = smul.addr %s188, 8
          %s192 = scalar_lea.hbm %s1, %s191
          %s193 = sshll.u32 %s192, 4
          %s194 = int_to_ptr.hbm [resolvable:$true] %s193
          %s195 = sshll.u32 %s187, 4
          %s196 = int_to_ptr.vmem [resolvable:$true] %s195
          %201 = dma.hbm_to_vmem [thread:$0]  %s194, 512, %s196, %s184, 128, 128, 8
        $region24: #{tpu_custom_call.1} parent=15 // pred_fallthru
          _
        // Predicated region
        $region25: #{tpu_custom_call.1} parent=15 // pred_check
          %p202 = pneg %p104
        $region26: #{tpu_custom_call.1} parent=15 // pred_check_branch
          %204 = sbr.rel (%p202) target = $region28
        $region27: #{tpu_custom_call.1} parent=15 // pred_region
          %s205 = sand.u32 %s18, 1
          %s206 = scalar_lea.sflag [#allocation6], %s205
          %s207 = sand.u32 %s94, 1
          %s208 = smul.addr %s207, 32
          %s209 = scalar_lea.vmem [#allocation7], %s208
          %s210 = smul.u32 4, %s25
          %212 = vsyncadd %s206, 0
          %s213 = smul.addr %s210, 8
          %s214 = scalar_lea.hbm %s2, %s213
          %s215 = sshll.u32 %s214, 4
          %s216 = int_to_ptr.hbm [resolvable:$true] %s215
          %s217 = sshll.u32 %s209, 4
          %s218 = int_to_ptr.vmem [resolvable:$true] %s217
          %223 = dma.hbm_to_vmem [thread:$0]  %s216, 512, %s218, %s206, 128, 128, 8
        $region28: #{tpu_custom_call.1} parent=15 // pred_fallthru
          _
      $region16: #{tpu_custom_call.1} parent=5 // pred_fallthru
        _
      %p224 = scmp.le.s32.totalorder 1, %s18
      %p225 = scmp.lt.s32.totalorder %s18, 3
      %p226 = pnand %p224, %p225
      %p227 = pneg %p226
      // Predicated region
      $region29: #{tpu_custom_call.1} parent=5 // pred_check
        _
      $region30: #{tpu_custom_call.1} parent=5 // pred_check_branch
        %229 = sbr.rel (%p226) target = $region32
      $region31: #{tpu_custom_call.1} parent=5 // pred_region
        %s230 = ssub.s32 %s18, 1
        %s231 = sand.u32 %s45, 1
        %s232 = scalar_lea.sflag [#allocation3], %s231
        %s233 = sand.u32 %s45, 1
        %s234 = smul.addr %s233, 32
        %s235 = scalar_lea.vmem [#allocation2], %s234
        // Predicated region
        $region33: #{tpu_custom_call.1} parent=31 // pred_check
          %p236 = pneg %p58
        $region34: #{tpu_custom_call.1} parent=31 // pred_check_branch
          %238 = sbr.rel (%p236) target = $region36
        $region35: #{tpu_custom_call.1} parent=31 // pred_region
          %240 = dma.done %s232, 512
        $region36: #{tpu_custom_call.1} parent=31 // pred_fallthru
          _
        %s241 = sand.u32 %s23, 1
        %s242 = scalar_lea.sflag [#allocation6], %s241
        %s243 = sand.u32 %s71, 1
        %s244 = smul.addr %s243, 32
        %s245 = scalar_lea.vmem [#allocation5], %s244
        // Predicated region
        $region37: #{tpu_custom_call.1} parent=31 // pred_check
          %p246 = pneg %p84
        $region38: #{tpu_custom_call.1} parent=31 // pred_check_branch
          %248 = sbr.rel (%p246) target = $region40
        $region39: #{tpu_custom_call.1} parent=31 // pred_region
          %250 = dma.done %s242, 512
        $region40: #{tpu_custom_call.1} parent=31 // pred_fallthru
          _
        %s251 = sand.u32 %s23, 1
        %s252 = scalar_lea.sflag [#allocation6], %s251
        %s253 = sand.u32 %s97, 1
        %s254 = smul.addr %s253, 32
        %s255 = scalar_lea.vmem [#allocation7], %s254
        // Predicated region
        $region41: #{tpu_custom_call.1} parent=31 // pred_check
          %p256 = pneg %p110
        $region42: #{tpu_custom_call.1} parent=31 // pred_check_branch
          %258 = sbr.rel (%p256) target = $region44
        $region43: #{tpu_custom_call.1} parent=31 // pred_region
          %260 = dma.done %s252, 512
        $region44: #{tpu_custom_call.1} parent=31 // pred_fallthru
          _
        %s261 = sand.u32 %s45, 1
        %s262 = scalar_lea.sflag [#allocation3], %s261
        %s263 = sand.u32 %s45, 1
        %s264 = smul.addr %s263, 32
        %s265 = scalar_lea.vmem [#allocation2], %s264
        %p266 = pneg %p58
        %p267 = pneg %p55
        %s268 = sand.u32 %s23, 1
        %s269 = scalar_lea.sflag [#allocation6], %s268
        %s270 = sand.u32 %s71, 1
        %s271 = smul.addr %s270, 32
        %s272 = scalar_lea.vmem [#allocation5], %s271
        %p273 = pneg %p84
        %p274 = pneg %p81
        %s275 = sand.u32 %s23, 1
        %s276 = scalar_lea.sflag [#allocation6], %s275
        %s277 = sand.u32 %s97, 1
        %s278 = smul.addr %s277, 32
        %s279 = scalar_lea.vmem [#allocation7], %s278
        %p280 = pneg %p110
        %p281 = pneg %p107
        %p282 = pneg %p138
        %p283 = pneg %p135
        %s284 = sand.u32 %s125, 1
        %s285 = scalar_lea.sflag [#allocation4], %s284
        %s286 = sand.u32 %s125, 1
        %s287 = smul.addr %s286, 32
        %s288 = scalar_lea.vmem [#allocation8], %s287
        %s289 = smul.u32 4, %s27
        %s290 = smul.u32 4, %s27
        %s291 = smul.u32 4, %s27
        %s292 = smul.u32 4, %s27
        %v293 = vld [vmem:[%s235] sm:$0xff]
        %v294 = vld [vmem:[%s235 + $0x8] sm:$0xff]
        %v295 = vld [vmem:[%s235 + $0x10] sm:$0xff]
        %v296 = vld [vmem:[%s235 + $0x18] sm:$0xff]
        %v297 = vmul.f32 %v293, 0.25503486
        %v298 = vmul.f32 %v294, 0.25503486
        %v299 = vmul.f32 %v295, 0.25503486
        %v300 = vmul.f32 %v296, 0.25503486
        %v301 = vld [vmem:[%s245] sm:$0xff]
        %v302 = vld [vmem:[%s245 + $0x8] sm:$0xff]
        %v303 = vld [vmem:[%s245 + $0x10] sm:$0xff]
        %v304 = vld [vmem:[%s245 + $0x18] sm:$0xff]
        %vm305 = vcmask 261120
        %v307 = vsel %vm305, %v297, 0
        %v310 = vsel %vm305, %v301, 0
        %312 = vmatpush.xpose.msra.mxu0 0.0
        %313 = vmatpush.xpose.msra.mxu0 0.0
        %314 = vmatpush.xpose.msra.mxu0 0.0
        %315 = vmatpush.xpose.msra.mxu0 0.0
        %316 = vmatpush.xpose.msra.mxu0 0.0
        %317 = vmatpush.xpose.msra.mxu0 0.0
        %318 = vmatpush.xpose.msra.mxu0 0.0
        %319 = vmatpush.xpose.msra.mxu0 0.0
        %320 = vmatpush.xpose.msra.mxu0 0.0
        %321 = vmatpush.xpose.msra.mxu0 0.0
        %322 = vmatpush.xpose.msra.mxu0 0.0
        %323 = vmatpush.xpose.msra.mxu0 0.0
        %324 = vmatpush.xpose.msra.mxu0 0.0
        %325 = vmatpush.xpose.msra.mxu0 0.0
        %326 = vmatpush.xpose.msra.mxu0 0.0
        %327 = vmatpush.xpose.msra.mxu0 %v310
        %328 = vmatmul.f32.gmra.mxu0 %v307
        %v329 = vpop.f32.mrf.mxu0
        %v330 = vadd.f32 0.0, %v329
        %331 = vdwg.mxu0
        %v333 = vsel %vm305, %v298, 0
        %v336 = vsel %vm305, %v302, 0
        %338 = vmatpush.xpose.msra.mxu0 0.0
        %339 = vmatpush.xpose.msra.mxu0 0.0
        %340 = vmatpush.xpose.msra.mxu0 0.0
        %341 = vmatpush.xpose.msra.mxu0 0.0
        %342 = vmatpush.xpose.msra.mxu0 0.0
        %343 = vmatpush.xpose.msra.mxu0 0.0
        %344 = vmatpush.xpose.msra.mxu0 0.0
        %345 = vmatpush.xpose.msra.mxu0 0.0
        %346 = vmatpush.xpose.msra.mxu0 0.0
        %347 = vmatpush.xpose.msra.mxu0 0.0
        %348 = vmatpush.xpose.msra.mxu0 0.0
        %349 = vmatpush.xpose.msra.mxu0 0.0
        %350 = vmatpush.xpose.msra.mxu0 0.0
        %351 = vmatpush.xpose.msra.mxu0 0.0
        %352 = vmatpush.xpose.msra.mxu0 0.0
        %353 = vmatpush.xpose.msra.mxu0 %v336
        %354 = vmatmul.f32.gmra.mxu0 %v333
        %v355 = vpop.f32.mrf.mxu0
        %v356 = vadd.f32 0.0, %v355
        %357 = vdwg.mxu0
        %v359 = vsel %vm305, %v299, 0
        %v362 = vsel %vm305, %v303, 0
        %364 = vmatpush.xpose.msra.mxu0 0.0
        %365 = vmatpush.xpose.msra.mxu0 0.0
        %366 = vmatpush.xpose.msra.mxu0 0.0
        %367 = vmatpush.xpose.msra.mxu0 0.0
        %368 = vmatpush.xpose.msra.mxu0 0.0
        %369 = vmatpush.xpose.msra.mxu0 0.0
        %370 = vmatpush.xpose.msra.mxu0 0.0
        %371 = vmatpush.xpose.msra.mxu0 0.0
        %372 = vmatpush.xpose.msra.mxu0 0.0
        %373 = vmatpush.xpose.msra.mxu0 0.0
        %374 = vmatpush.xpose.msra.mxu0 0.0
        %375 = vmatpush.xpose.msra.mxu0 0.0
        %376 = vmatpush.xpose.msra.mxu0 0.0
        %377 = vmatpush.xpose.msra.mxu0 0.0
        %378 = vmatpush.xpose.msra.mxu0 0.0
        %379 = vmatpush.xpose.msra.mxu0 %v362
        %380 = vmatmul.f32.gmra.mxu0 %v359
        %v381 = vpop.f32.mrf.mxu0
        %v382 = vadd.f32 0.0, %v381
        %383 = vdwg.mxu0
        %v385 = vsel %vm305, %v300, 0
        %v388 = vsel %vm305, %v304, 0
        %390 = vmatpush.xpose.msra.mxu0 0.0
        %391 = vmatpush.xpose.msra.mxu0 0.0
        %392 = vmatpush.xpose.msra.mxu0 0.0
        %393 = vmatpush.xpose.msra.mxu0 0.0
        %394 = vmatpush.xpose.msra.mxu0 0.0
        %395 = vmatpush.xpose.msra.mxu0 0.0
        %396 = vmatpush.xpose.msra.mxu0 0.0
        %397 = vmatpush.xpose.msra.mxu0 0.0
        %398 = vmatpush.xpose.msra.mxu0 0.0
        %399 = vmatpush.xpose.msra.mxu0 0.0
        %400 = vmatpush.xpose.msra.mxu0 0.0
        %401 = vmatpush.xpose.msra.mxu0 0.0
        %402 = vmatpush.xpose.msra.mxu0 0.0
        %403 = vmatpush.xpose.msra.mxu0 0.0
        %404 = vmatpush.xpose.msra.mxu0 0.0
        %405 = vmatpush.xpose.msra.mxu0 %v388
        %406 = vmatmul.f32.gmra.mxu0 %v385
        %v407 = vpop.f32.mrf.mxu0
        %v408 = vadd.f32 0.0, %v407
        %409 = vdwg.mxu0
        %vm410 = vcmask 64512
        %v411 = vsel %vm410, %v330, -inf
        %412 = vmax.xlane.f32.xlu0 %v411
        %v413 = vpop.xlane.xlu0 %412
        %v414 = vsel %vm410, %v356, -inf
        %415 = vmax.xlane.f32.xlu0 %v414
        %v416 = vpop.xlane.xlu0 %415
        %v417 = vsel %vm410, %v382, -inf
        %418 = vmax.xlane.f32.xlu0 %v417
        %v419 = vpop.xlane.xlu0 %418
        %v420 = vsel %vm410, %v408, -inf
        %421 = vmax.xlane.f32.xlu0 %v420
        %v422 = vpop.xlane.xlu0 %421
        %v423 = vsub.f32 %v330, %v413
        %v424 = vsub.f32 %v356, %v416
        %v425 = vsub.f32 %v382, %v419
        %v426 = vsub.f32 %v408, %v422
        %v427 = vpow.pop %v423
        %v428 = vpow.pop %v424
        %v429 = vpow.pop %v425
        %v430 = vpow.pop %v426
        %v431 = vsel %vm410, %v427, 0.0
        %432 = vadd.xlane.f32.xlu0 %v431
        %v433 = vpop.xlane.xlu0 %432
        %v434 = vsel %vm410, %v428, 0.0
        %435 = vadd.xlane.f32.xlu0 %v434
        %v436 = vpop.xlane.xlu0 %435
        %v437 = vsel %vm410, %v429, 0.0
        %438 = vadd.xlane.f32.xlu0 %v437
        %v439 = vpop.xlane.xlu0 %438
        %v440 = vsel %vm410, %v430, 0.0
        %441 = vadd.xlane.f32.xlu0 %v440
        %v442 = vpop.xlane.xlu0 %441
        %v443 = vld [vmem:[%s255] sm:$0xff]
        %v444 = vld [vmem:[%s255 + $0x8] sm:$0xff]
        %v445 = vld [vmem:[%s255 + $0x10] sm:$0xff]
        %v446 = vld [vmem:[%s255 + $0x18] sm:$0xff]
        %v448 = vsel %vm410, %v427, 0
        %450 = vmatpush.msra.mxu0 0.0
        %451 = vmatpush.msra.mxu0 0.0
        %452 = vmatpush.msra.mxu0 0.0
        %453 = vmatpush.msra.mxu0 0.0
        %454 = vmatpush.msra.mxu0 0.0
        %455 = vmatpush.msra.mxu0 0.0
        %456 = vmatpush.msra.mxu0 0.0
        %457 = vmatpush.msra.mxu0 0.0
        %458 = vmatpush.msra.mxu0 0.0
        %459 = vmatpush.msra.mxu0 0.0
        %460 = vmatpush.msra.mxu0 0.0
        %461 = vmatpush.msra.mxu0 0.0
        %462 = vmatpush.msra.mxu0 0.0
        %463 = vmatpush.msra.mxu0 0.0
        %464 = vmatpush.msra.mxu0 0.0
        %465 = vmatpush.msra.mxu0 %v443
        %466 = vmatmul.f32.gmra.mxu0 %v448
        %v467 = vpop.f32.mrf.mxu0
        %v468 = vadd.f32 0.0, %v467
        %469 = vdwg.mxu0
        %v471 = vsel %vm410, %v428, 0
        %473 = vmatpush.msra.mxu0 0.0
        %474 = vmatpush.msra.mxu0 0.0
        %475 = vmatpush.msra.mxu0 0.0
        %476 = vmatpush.msra.mxu0 0.0
        %477 = vmatpush.msra.mxu0 0.0
        %478 = vmatpush.msra.mxu0 0.0
        %479 = vmatpush.msra.mxu0 0.0
        %480 = vmatpush.msra.mxu0 0.0
        %481 = vmatpush.msra.mxu0 0.0
        %482 = vmatpush.msra.mxu0 0.0
        %483 = vmatpush.msra.mxu0 0.0
        %484 = vmatpush.msra.mxu0 0.0
        %485 = vmatpush.msra.mxu0 0.0
        %486 = vmatpush.msra.mxu0 0.0
        %487 = vmatpush.msra.mxu0 0.0
        %488 = vmatpush.msra.mxu0 %v444
        %489 = vmatmul.f32.gmra.mxu0 %v471
        %v490 = vpop.f32.mrf.mxu0
        %v491 = vadd.f32 0.0, %v490
        %492 = vdwg.mxu0
        %v494 = vsel %vm410, %v429, 0
        %496 = vmatpush.msra.mxu0 0.0
        %497 = vmatpush.msra.mxu0 0.0
        %498 = vmatpush.msra.mxu0 0.0
        %499 = vmatpush.msra.mxu0 0.0
        %500 = vmatpush.msra.mxu0 0.0
        %501 = vmatpush.msra.mxu0 0.0
        %502 = vmatpush.msra.mxu0 0.0
        %503 = vmatpush.msra.mxu0 0.0
        %504 = vmatpush.msra.mxu0 0.0
        %505 = vmatpush.msra.mxu0 0.0
        %506 = vmatpush.msra.mxu0 0.0
        %507 = vmatpush.msra.mxu0 0.0
        %508 = vmatpush.msra.mxu0 0.0
        %509 = vmatpush.msra.mxu0 0.0
        %510 = vmatpush.msra.mxu0 0.0
        %511 = vmatpush.msra.mxu0 %v445
        %512 = vmatmul.f32.gmra.mxu0 %v494
        %v513 = vpop.f32.mrf.mxu0
        %v514 = vadd.f32 0.0, %v513
        %515 = vdwg.mxu0
        %v517 = vsel %vm410, %v430, 0
        %519 = vmatpush.msra.mxu0 0.0
        %520 = vmatpush.msra.mxu0 0.0
        %521 = vmatpush.msra.mxu0 0.0
        %522 = vmatpush.msra.mxu0 0.0
        %523 = vmatpush.msra.mxu0 0.0
        %524 = vmatpush.msra.mxu0 0.0
        %525 = vmatpush.msra.mxu0 0.0
        %526 = vmatpush.msra.mxu0 0.0
        %527 = vmatpush.msra.mxu0 0.0
        %528 = vmatpush.msra.mxu0 0.0
        %529 = vmatpush.msra.mxu0 0.0
        %530 = vmatpush.msra.mxu0 0.0
        %531 = vmatpush.msra.mxu0 0.0
        %532 = vmatpush.msra.mxu0 0.0
        %533 = vmatpush.msra.mxu0 0.0
        %534 = vmatpush.msra.mxu0 %v446
        %535 = vmatmul.f32.gmra.mxu0 %v517
        %v536 = vpop.f32.mrf.mxu0
        %v537 = vadd.f32 0.0, %v536
        %538 = vdwg.mxu0
        %v539 = vrcp.pop %v433
        %v540 = vmul.f32 %v433, %v539
        %v541 = vsub.f32 1.0, %v540
        %v542 = vmul.f32 %v539, %v541
        %v543 = vadd.f32 %v539, %v542
        %vm544 = vweird.f32 %v433
        %vm545 = vweird.f32 %v539
        %vm546 = vmor %vm544, %vm545
        %v547 = vsel %vm546, %v539, %v543
        %v548 = vand.u32 2147483647, %v433
        %vm549 = vcmp.eq.f32.partialorder %v548, 8.507059e+37
        %v550 = vand.u32 %v433, 2147483648
        %v551 = vor.u32 1.1754944e-38, %v550
        %v552 = vsel %vm549, %v551, %v547
        %v553 = vmul.f32 1.0, %v552
        %v554 = vrcp.pop %v436
        %v555 = vmul.f32 %v436, %v554
        %v556 = vsub.f32 1.0, %v555
        %v557 = vmul.f32 %v554, %v556
        %v558 = vadd.f32 %v554, %v557
        %vm559 = vweird.f32 %v436
        %vm560 = vweird.f32 %v554
        %vm561 = vmor %vm559, %vm560
        %v562 = vsel %vm561, %v554, %v558
        %v563 = vand.u32 2147483647, %v436
        %vm564 = vcmp.eq.f32.partialorder %v563, 8.507059e+37
        %v565 = vand.u32 %v436, 2147483648
        %v566 = vor.u32 1.1754944e-38, %v565
        %v567 = vsel %vm564, %v566, %v562
        %v568 = vmul.f32 1.0, %v567
        %v569 = vrcp.pop %v439
        %v570 = vmul.f32 %v439, %v569
        %v571 = vsub.f32 1.0, %v570
        %v572 = vmul.f32 %v569, %v571
        %v573 = vadd.f32 %v569, %v572
        %vm574 = vweird.f32 %v439
        %vm575 = vweird.f32 %v569
        %vm576 = vmor %vm574, %vm575
        %v577 = vsel %vm576, %v569, %v573
        %v578 = vand.u32 2147483647, %v439
        %vm579 = vcmp.eq.f32.partialorder %v578, 8.507059e+37
        %v580 = vand.u32 %v439, 2147483648
        %v581 = vor.u32 1.1754944e-38, %v580
        %v582 = vsel %vm579, %v581, %v577
        %v583 = vmul.f32 1.0, %v582
        %v584 = vrcp.pop %v442
        %v585 = vmul.f32 %v442, %v584
        %v586 = vsub.f32 1.0, %v585
        %v587 = vmul.f32 %v584, %v586
        %v588 = vadd.f32 %v584, %v587
        %vm589 = vweird.f32 %v442
        %vm590 = vweird.f32 %v584
        %vm591 = vmor %vm589, %vm590
        %v592 = vsel %vm591, %v584, %v588
        %v593 = vand.u32 2147483647, %v442
        %vm594 = vcmp.eq.f32.partialorder %v593, 8.507059e+37
        %v595 = vand.u32 %v442, 2147483648
        %v596 = vor.u32 1.1754944e-38, %v595
        %v597 = vsel %vm594, %v596, %v592
        %v598 = vmul.f32 1.0, %v597
        %v599 = vmul.f32 %v468, %v553
        %v600 = vmul.f32 %v491, %v568
        %v601 = vmul.f32 %v514, %v583
        %v602 = vmul.f32 %v537, %v598
        %603 = vst [vmem:[%s288] sm:$0xff] %v599
        %604 = vst [vmem:[%s288 + $0x8] sm:$0xff] %v600
        %605 = vst [vmem:[%s288 + $0x10] sm:$0xff] %v601
        %606 = vst [vmem:[%s288 + $0x18] sm:$0xff] %v602
        %s607 = sand.u32 %s125, 1
        %s608 = scalar_lea.sflag [#allocation4], %s607
        %s609 = sand.u32 %s125, 1
        %s610 = smul.addr %s609, 32
        %s611 = scalar_lea.vmem [#allocation8], %s610
        // Predicated region
        $region45: #{tpu_custom_call.1} parent=31 // pred_check
          %p612 = pneg %p135
        $region46: #{tpu_custom_call.1} parent=31 // pred_check_branch
          %614 = sbr.rel (%p612) target = $region48
        $region47: #{tpu_custom_call.1} parent=31 // pred_region
          %s615 = smul.u32 4, %s27
          %617 = vsyncadd %s608, 0
          %s618 = sadd.s32 %s28, %s615
          %s619 = smul.addr %s618, 8
          %s620 = scalar_lea.hbm %s3, %s619
          %s621 = sshll.u32 %s611, 4
          %s622 = int_to_ptr.vmem [resolvable:$true] %s621
          %s623 = sshll.u32 %s620, 4
          %s624 = int_to_ptr.hbm [resolvable:$true] %s623
          %629 = dma.vmem_to_hbm [thread:$0]  %s622, 512, %s624, %s608, 128, 128, 8
        $region48: #{tpu_custom_call.1} parent=31 // pred_fallthru
          _
      $region32: #{tpu_custom_call.1} parent=5 // pred_fallthru
        _
      %p630 = scmp.le.s32.totalorder 2, %s18
      // Predicated region
      $region49: #{tpu_custom_call.1} parent=5 // pred_check
        %p631 = pneg %p630
      $region50: #{tpu_custom_call.1} parent=5 // pred_check_branch
        %633 = sbr.rel (%p631) target = $region52
      $region51: #{tpu_custom_call.1} parent=5 // pred_region
        %s634 = ssub.s32 %s18, 2
        // Predicated region
        $region53: #{tpu_custom_call.1} parent=51 // pred_check
          %p635 = pneg %p141
        $region54: #{tpu_custom_call.1} parent=51 // pred_check_branch
          %637 = sbr.rel (%p635) target = $region56
        $region55: #{tpu_custom_call.1} parent=51 // pred_region
          %s638 = sand.u32 %s126, 1
          %s639 = scalar_lea.sflag [#allocation4], %s638
          %s640 = sand.u32 %s126, 1
          %s641 = smul.addr %s640, 32
          %s642 = scalar_lea.vmem [#allocation8], %s641
          %644 = dma.done %s639, 512
        $region56: #{tpu_custom_call.1} parent=51 // pred_fallthru
          _
      $region52: #{tpu_custom_call.1} parent=5 // pred_fallthru
        _
    $region6: #{tpu_custom_call.1} parent=1 // loop_footer
      %s22 = sadd.s32 1, %s18
    $region7: #{tpu_custom_call.1} parent=1 // loop_footer_branch
      %17 = sbr.rel target = $region3
    $region8: #{tpu_custom_call.1} parent=1 // loop_exit
      _
    %645 = vsyncpa [#allocation3], 1
    %s646 = scalar_lea.sflag [#allocation3], 1
    %647 = vsyncpa %s646, 1
    %648 = vsyncpa [#allocation6], 1
    %s649 = scalar_lea.sflag [#allocation6], 1
    %650 = vsyncpa %s649, 1
    %651 = vsyncpa [#allocation4], 1
    %s652 = scalar_lea.sflag [#allocation4], 1
    %653 = vsyncpa %s652, 1

</llo_original>
